<compile_context>
chip_gen: v7x
topology: tpu7x:2x2x1
jax: 0.10.0
libtpu: 0.0.40
codegen_flags: <defaults>
</compile_context>

<pallas_src>
import jax
import jax.numpy as jnp
from jax import lax
from jax.experimental import pallas as pl
from jax.experimental.pallas import tpu as pltpu


def basic_block_kernel(x_ref, w1_ref, w2_ref, s1_ref, b1_ref, s2_ref, b2_ref,
                       o_ref, pad_ref):
    # x_ref  : (1, H, W*C)      lane-dense input slab (one batch element)
    # w*_ref : (3, W*C, W*C)    band matrices, one per ky
    # s*_ref : (1, W*C)         fused BN scale, tiled per-channel -> lane slab
    # b*_ref : (1, W*C)         fused BN bias,  tiled per-channel -> lane slab
    # o_ref  : (1, H, W*C)      lane-dense output slab
    # pad_ref: (H+2, W*C)       VMEM scratch with a 1-row zero halo (reused
    #                           for the input and the intermediate h)
    _, H, WC = x_ref.shape

    # Zero halo rows once; interior rows get overwritten below.
    pad_ref[...] = jnp.zeros_like(pad_ref)
    pad_ref[1:H + 1, :] = x_ref[0]

    def band_conv(w_ref):
        # out[h] = sum_ky pad[h + ky] @ B_ky   (zero W-padding folded into B)
        acc = jnp.dot(pad_ref[0:H, :], w_ref[0],
                      preferred_element_type=jnp.float32)
        acc = acc + jnp.dot(pad_ref[1:H + 1, :], w_ref[1],
                            preferred_element_type=jnp.float32)
        acc = acc + jnp.dot(pad_ref[2:H + 2, :], w_ref[2],
                            preferred_element_type=jnp.float32)
        return acc                                           # (H, W*C) f32

    # conv1 + bn1 + relu  (h stays in VMEM)
    h = jnp.maximum(band_conv(w1_ref) * s1_ref[...] + b1_ref[...], 0.0)
    pad_ref[1:H + 1, :] = h

    # conv2 + bn2 + residual add + relu
    y = band_conv(w2_ref) * s2_ref[...] + b2_ref[...]
    y = jnp.maximum(y + x_ref[0], 0.0)
    o_ref[0] = y.astype(o_ref.dtype)


def _fused_bn_slab(gamma, beta, mean, var, width, eps=1e-5):
    scale = gamma / jnp.sqrt(var + eps)
    bias = beta - mean * scale
    # per-channel -> lane-dense (1, W*C) slab (index = w*C + c)
    return (jnp.tile(scale, width).reshape(1, -1),
            jnp.tile(bias, width).reshape(1, -1))


def _band_matrices(w, width):
    """(Cout, Cin, 3, 3) torch weights -> (3, W*Cin, W*Cout) band matrices."""
    w = w.astype(jnp.float32)
    wt = jnp.transpose(w, (2, 3, 1, 0))            # (ky, kx, Cin, Cout)
    mats = []
    for ky in range(3):
        b = jnp.zeros((width * w.shape[1], width * w.shape[0]), jnp.float32)
        for kx in range(3):
            # B[w_in*Cin+ci, w_out*Cout+co] = wt[ky,kx,ci,co] iff
            #   w_in == w_out + (kx - 1)
            shift = jnp.eye(width, k=-(kx - 1), dtype=jnp.float32)
            b = b + jnp.kron(shift, wt[ky, kx])
        mats.append(b)
    return jnp.stack(mats)                          # (3, W*Cin, W*Cout)


def basic_block_forward(x_nchw, params):
    """BasicBlock forward (stride=1, downsample=None). Input/output NCHW."""
    N, Cin, H, W = x_nchw.shape
    Cout = params["w1"].shape[0]
    # Residual add requires matching channel count when downsample is None.
    assert Cin == Cout, "BasicBlock with downsample=None requires Cin == Cout"
    C = Cin
    WC = W * C

    # NCHW -> NHWC -> lane-dense (N, H, W*C) slab (reshape is free).
    x = jnp.transpose(x_nchw, (0, 2, 3, 1)).astype(jnp.float32)
    x_slab = x.reshape(N, H, WC)

    w1 = _band_matrices(params["w1"], W)
    w2 = _band_matrices(params["w2"], W)
    s1, b1 = _fused_bn_slab(params["g1"], params["b1"],
                            params["m1"], params["v1"], W)
    s2, b2 = _fused_bn_slab(params["g2"], params["b2"],
                            params["m2"], params["v2"], W)

    cost = pl.CostEstimate(
        flops=2 * N * 2 * 3 * H * WC * WC,     # 2 convs x 3 band matmuls
        transcendentals=0,
        bytes_accessed=4 * (2 * N * H * WC + 2 * 3 * WC * WC + 4 * WC),
    )

    out_slab = pl.pallas_call(
        basic_block_kernel,
        out_shape=jax.ShapeDtypeStruct((N, H, WC), jnp.float32),
        grid_spec=pltpu.PrefetchScalarGridSpec(
            num_scalar_prefetch=0,
            grid=(N,),
            in_specs=[
                pl.BlockSpec((1, H, WC), lambda n: (n, 0, 0)),
                pl.BlockSpec((3, WC, WC), lambda n: (0, 0, 0)),
                pl.BlockSpec((3, WC, WC), lambda n: (0, 0, 0)),
                pl.BlockSpec((1, WC), lambda n: (0, 0)),
                pl.BlockSpec((1, WC), lambda n: (0, 0)),
                pl.BlockSpec((1, WC), lambda n: (0, 0)),
                pl.BlockSpec((1, WC), lambda n: (0, 0)),
            ],
            out_specs=pl.BlockSpec((1, H, WC), lambda n: (n, 0, 0)),
            scratch_shapes=[
                pltpu.VMEM((H + 2, WC), jnp.float32),   # halo scratch (x / h)
            ],
        ),
        compiler_params=pltpu.CompilerParams(
            dimension_semantics=("parallel",)),
        cost_estimate=cost,
    )(x_slab, w1, w2, s1, b1, s2, b2)

    out = out_slab.reshape(N, H, W, C)
    return jnp.transpose(out, (0, 3, 1, 2))  # back to NCHW


# ---------------- pure-JAX reference (for validation) ----------------
def _ref_conv3x3(x_nchw, w):
    return lax.conv_general_dilated(
        x_nchw, w, window_strides=(1, 1), padding=((1, 1), (1, 1)),
        dimension_numbers=("NCHW", "OIHW", "NCHW"))


def basic_block_ref(x, p, eps=1e-5):
    def bn(h, g, b, m, v):
        g = g.reshape(1, -1, 1, 1); b = b.reshape(1, -1, 1, 1)
        m = m.reshape(1, -1, 1, 1); v = v.reshape(1, -1, 1, 1)
        return (h - m) / jnp.sqrt(v + eps) * g + b

    out = _ref_conv3x3(x, p["w1"])
    out = jnp.maximum(bn(out, p["g1"], p["b1"], p["m1"], p["v1"]), 0.0)
    out = _ref_conv3x3(out, p["w2"])
    out = bn(out, p["g2"], p["b2"], p["m2"], p["v2"])
    out = out + x
    return jnp.maximum(out, 0.0)


if __name__ == "__main__":
    # Small shapes: inplanes = planes = 8, stride = 1, downsample = None.
    # W * C = 128 -> activation slabs are exactly lane-width.
    N, C, H, W = 2, 8, 16, 16
    key = jax.random.PRNGKey(0)
    ks = jax.random.split(key, 9)

    x = jax.random.normal(ks[0], (N, C, H, W), jnp.float32)
    params = {
        "w1": jax.random.normal(ks[1], (C, C, 3, 3), jnp.float32) * 0.1,
        "w2": jax.random.normal(ks[2], (C, C, 3, 3), jnp.float32) * 0.1,
        "g1": 1.0 + 0.1 * jax.random.normal(ks[3], (C,), jnp.float32),
        "b1": 0.1 * jax.random.normal(ks[4], (C,), jnp.float32),
        "m1": 0.1 * jax.random.normal(ks[5], (C,), jnp.float32),
        "v1": jnp.abs(1.0 + 0.1 * jax.random.normal(ks[6], (C,), jnp.float32)),
        "g2": 1.0 + 0.1 * jax.random.normal(ks[7], (C,), jnp.float32),
        "b2": 0.1 * jax.random.normal(ks[8], (C,), jnp.float32),
        "m2": jnp.zeros((C,), jnp.float32),
        "v2": jnp.ones((C,), jnp.float32),
    }

    out = jax.block_until_ready(basic_block_forward(x, params))
    ref = jax.block_until_ready(basic_block_ref(x, params))

    assert out.shape == (N, C, H, W)
    assert jnp.allclose(out, ref, atol=1e-3, rtol=1e-3), (
        float(jnp.max(jnp.abs(out - ref))))
    print("KERNEL_OK")
</pallas_src>

<mosaic_0001>
module attributes {stable_mosaic.version = 11 : i64} {
  func.func @basic_block_kernel(%arg0: i32, %arg1: memref<1x16x128xf32, #tpu.memory_space<vmem>>, %arg2: memref<3x128x128xf32, #tpu.memory_space<vmem>>, %arg3: memref<3x128x128xf32, #tpu.memory_space<vmem>>, %arg4: memref<1x128xf32, #tpu.memory_space<vmem>>, %arg5: memref<1x128xf32, #tpu.memory_space<vmem>>, %arg6: memref<1x128xf32, #tpu.memory_space<vmem>>, %arg7: memref<1x128xf32, #tpu.memory_space<vmem>>, %arg8: memref<1x16x128xf32, #tpu.memory_space<vmem>>, %arg9: memref<18x128xf32, #tpu.memory_space<vmem>>) attributes {dimension_semantics = [#tpu.dimension_semantics<parallel>], iteration_bounds = array<i64: 2>, scalar_prefetch = 0 : i64, scratch_operands = 1 : i64, tpu.core_type = #tpu.core_type<tc>, window_params = [{transform_indices = @transform_0, window_bounds = array<i64: 1, 16, 128>}, {pipeline_mode = #tpu.pipeline_mode<synchronous>, transform_indices = @transform_1, window_bounds = array<i64: 3, 128, 128>}, {pipeline_mode = #tpu.pipeline_mode<synchronous>, transform_indices = @transform_2, window_bounds = array<i64: 3, 128, 128>}, {pipeline_mode = #tpu.pipeline_mode<synchronous>, transform_indices = @transform_3, window_bounds = array<i64: 1, 128>}, {pipeline_mode = #tpu.pipeline_mode<synchronous>, transform_indices = @transform_4, window_bounds = array<i64: 1, 128>}, {pipeline_mode = #tpu.pipeline_mode<synchronous>, transform_indices = @transform_5, window_bounds = array<i64: 1, 128>}, {pipeline_mode = #tpu.pipeline_mode<synchronous>, transform_indices = @transform_6, window_bounds = array<i64: 1, 128>}, {transform_indices = @transform_7, window_bounds = array<i64: 1, 16, 128>}]} {
    %cst = arith.constant 0.000000e+00 : f32
    %0 = vector.broadcast %cst : f32 to vector<18x128xf32>
    %c0 = arith.constant 0 : index
    %c0_0 = arith.constant 0 : index
    %1 = vector.load %arg9[%c0, %c0_0] : memref<18x128xf32, #tpu.memory_space<vmem>>, vector<18x128xf32>
    tpu.vector_store %arg9[%c0, %c0_0], %0 {strides = array<i32>} : memref<18x128xf32, #tpu.memory_space<vmem>>, vector<18x128xf32>,
    %c0_1 = arith.constant 0 : index
    %c0_2 = arith.constant 0 : index
    %c0_3 = arith.constant 0 : index
    %2 = vector.load %arg1[%c0_1, %c0_2, %c0_3] : memref<1x16x128xf32, #tpu.memory_space<vmem>>, vector<1x16x128xf32>
    %3 = vector.shape_cast %2 : vector<1x16x128xf32> to vector<16x128xf32>
    %c1 = arith.constant 1 : index
    %c0_4 = arith.constant 0 : index
    %4 = vector.load %arg9[%c1, %c0_4] : memref<18x128xf32, #tpu.memory_space<vmem>>, vector<16x128xf32>
    tpu.vector_store %arg9[%c1, %c0_4], %3 {strides = array<i32>} : memref<18x128xf32, #tpu.memory_space<vmem>>, vector<16x128xf32>,
    %c0_5 = arith.constant 0 : index
    %c0_6 = arith.constant 0 : index
    %5 = vector.load %arg9[%c0_5, %c0_6] : memref<18x128xf32, #tpu.memory_space<vmem>>, vector<16x128xf32>
    %c0_7 = arith.constant 0 : index
    %c0_8 = arith.constant 0 : index
    %c0_9 = arith.constant 0 : index
    %6 = vector.load %arg2[%c0_7, %c0_8, %c0_9] : memref<3x128x128xf32, #tpu.memory_space<vmem>>, vector<1x128x128xf32>
    %7 = vector.shape_cast %6 : vector<1x128x128xf32> to vector<128x128xf32>
    %cst_10 = arith.constant dense<0.000000e+00> : vector<16x128xf32>
    %8 = tpu.matmul %5, %7, %cst_10 {dimension_numbers = #tpu.dot_dimension_numbers<[1], [0], [0], [1], [0, 0, 1, 1], [], []>} : vector<16x128xf32>, vector<128x128xf32>, vector<16x128xf32> -> vector<16x128xf32>
    %c1_11 = arith.constant 1 : index
    %c0_12 = arith.constant 0 : index
    %9 = vector.load %arg9[%c1_11, %c0_12] : memref<18x128xf32, #tpu.memory_space<vmem>>, vector<16x128xf32>
    %c1_13 = arith.constant 1 : index
    %c0_14 = arith.constant 0 : index
    %c0_15 = arith.constant 0 : index
    %10 = vector.load %arg2[%c1_13, %c0_14, %c0_15] : memref<3x128x128xf32, #tpu.memory_space<vmem>>, vector<1x128x128xf32>
    %11 = vector.shape_cast %10 : vector<1x128x128xf32> to vector<128x128xf32>
    %cst_16 = arith.constant dense<0.000000e+00> : vector<16x128xf32>
    %12 = tpu.matmul %9, %11, %cst_16 {dimension_numbers = #tpu.dot_dimension_numbers<[1], [0], [0], [1], [0, 0, 1, 1], [], []>} : vector<16x128xf32>, vector<128x128xf32>, vector<16x128xf32> -> vector<16x128xf32>
    %13 = arith.addf %8, %12 : vector<16x128xf32>
    %c2 = arith.constant 2 : index
    %c0_17 = arith.constant 0 : index
    %14 = vector.load %arg9[%c2, %c0_17] : memref<18x128xf32, #tpu.memory_space<vmem>>, vector<16x128xf32>
    %c2_18 = arith.constant 2 : index
    %c0_19 = arith.constant 0 : index
    %c0_20 = arith.constant 0 : index
    %15 = vector.load %arg2[%c2_18, %c0_19, %c0_20] : memref<3x128x128xf32, #tpu.memory_space<vmem>>, vector<1x128x128xf32>
    %16 = vector.shape_cast %15 : vector<1x128x128xf32> to vector<128x128xf32>
    %cst_21 = arith.constant dense<0.000000e+00> : vector<16x128xf32>
    %17 = tpu.matmul %14, %16, %cst_21 {dimension_numbers = #tpu.dot_dimension_numbers<[1], [0], [0], [1], [0, 0, 1, 1], [], []>} : vector<16x128xf32>, vector<128x128xf32>, vector<16x128xf32> -> vector<16x128xf32>
    %18 = arith.addf %13, %17 : vector<16x128xf32>
    %c0_22 = arith.constant 0 : index
    %c0_23 = arith.constant 0 : index
    %19 = vector.load %arg4[%c0_22, %c0_23] : memref<1x128xf32, #tpu.memory_space<vmem>>, vector<1x128xf32>
    %20 = vector.broadcast %19 : vector<1x128xf32> to vector<16x128xf32>
    %21 = arith.mulf %18, %20 : vector<16x128xf32>
    %c0_24 = arith.constant 0 : index
    %c0_25 = arith.constant 0 : index
    %22 = vector.load %arg5[%c0_24, %c0_25] : memref<1x128xf32, #tpu.memory_space<vmem>>, vector<1x128xf32>
    %23 = vector.broadcast %22 : vector<1x128xf32> to vector<16x128xf32>
    %24 = arith.addf %21, %23 : vector<16x128xf32>
    %cst_26 = arith.constant 0.000000e+00 : f32
    %25 = vector.broadcast %cst_26 : f32 to vector<16x128xf32>
    %26 = arith.maximumf %24, %25 : vector<16x128xf32>
    %c1_27 = arith.constant 1 : index
    %c0_28 = arith.constant 0 : index
    %27 = vector.load %arg9[%c1_27, %c0_28] : memref<18x128xf32, #tpu.memory_space<vmem>>, vector<16x128xf32>
    tpu.vector_store %arg9[%c1_27, %c0_28], %26 {strides = array<i32>} : memref<18x128xf32, #tpu.memory_space<vmem>>, vector<16x128xf32>,
    %c0_29 = arith.constant 0 : index
    %c0_30 = arith.constant 0 : index
    %28 = vector.load %arg9[%c0_29, %c0_30] : memref<18x128xf32, #tpu.memory_space<vmem>>, vector<16x128xf32>
    %c0_31 = arith.constant 0 : index
    %c0_32 = arith.constant 0 : index
    %c0_33 = arith.constant 0 : index
    %29 = vector.load %arg3[%c0_31, %c0_32, %c0_33] : memref<3x128x128xf32, #tpu.memory_space<vmem>>, vector<1x128x128xf32>
    %30 = vector.shape_cast %29 : vector<1x128x128xf32> to vector<128x128xf32>
    %cst_34 = arith.constant dense<0.000000e+00> : vector<16x128xf32>
    %31 = tpu.matmul %28, %30, %cst_34 {dimension_numbers = #tpu.dot_dimension_numbers<[1], [0], [0], [1], [0, 0, 1, 1], [], []>} : vector<16x128xf32>, vector<128x128xf32>, vector<16x128xf32> -> vector<16x128xf32>
    %c1_35 = arith.constant 1 : index
    %c0_36 = arith.constant 0 : index
    %32 = vector.load %arg9[%c1_35, %c0_36] : memref<18x128xf32, #tpu.memory_space<vmem>>, vector<16x128xf32>
    %c1_37 = arith.constant 1 : index
    %c0_38 = arith.constant 0 : index
    %c0_39 = arith.constant 0 : index
    %33 = vector.load %arg3[%c1_37, %c0_38, %c0_39] : memref<3x128x128xf32, #tpu.memory_space<vmem>>, vector<1x128x128xf32>
    %34 = vector.shape_cast %33 : vector<1x128x128xf32> to vector<128x128xf32>
    %cst_40 = arith.constant dense<0.000000e+00> : vector<16x128xf32>
    %35 = tpu.matmul %32, %34, %cst_40 {dimension_numbers = #tpu.dot_dimension_numbers<[1], [0], [0], [1], [0, 0, 1, 1], [], []>} : vector<16x128xf32>, vector<128x128xf32>, vector<16x128xf32> -> vector<16x128xf32>
    %36 = arith.addf %31, %35 : vector<16x128xf32>
    %c2_41 = arith.constant 2 : index
    %c0_42 = arith.constant 0 : index
    %37 = vector.load %arg9[%c2_41, %c0_42] : memref<18x128xf32, #tpu.memory_space<vmem>>, vector<16x128xf32>
    %c2_43 = arith.constant 2 : index
    %c0_44 = arith.constant 0 : index
    %c0_45 = arith.constant 0 : index
    %38 = vector.load %arg3[%c2_43, %c0_44, %c0_45] : memref<3x128x128xf32, #tpu.memory_space<vmem>>, vector<1x128x128xf32>
    %39 = vector.shape_cast %38 : vector<1x128x128xf32> to vector<128x128xf32>
    %cst_46 = arith.constant dense<0.000000e+00> : vector<16x128xf32>
    %40 = tpu.matmul %37, %39, %cst_46 {dimension_numbers = #tpu.dot_dimension_numbers<[1], [0], [0], [1], [0, 0, 1, 1], [], []>} : vector<16x128xf32>, vector<128x128xf32>, vector<16x128xf32> -> vector<16x128xf32>
    %41 = arith.addf %36, %40 : vector<16x128xf32>
    %c0_47 = arith.constant 0 : index
    %c0_48 = arith.constant 0 : index
    %42 = vector.load %arg6[%c0_47, %c0_48] : memref<1x128xf32, #tpu.memory_space<vmem>>, vector<1x128xf32>
    %43 = vector.broadcast %42 : vector<1x128xf32> to vector<16x128xf32>
    %44 = arith.mulf %41, %43 : vector<16x128xf32>
    %c0_49 = arith.constant 0 : index
    %c0_50 = arith.constant 0 : index
    %45 = vector.load %arg7[%c0_49, %c0_50] : memref<1x128xf32, #tpu.memory_space<vmem>>, vector<1x128xf32>
    %46 = vector.broadcast %45 : vector<1x128xf32> to vector<16x128xf32>
    %47 = arith.addf %44, %46 : vector<16x128xf32>
    %c0_51 = arith.constant 0 : index
    %c0_52 = arith.constant 0 : index
    %c0_53 = arith.constant 0 : index
    %48 = vector.load %arg1[%c0_51, %c0_52, %c0_53] : memref<1x16x128xf32, #tpu.memory_space<vmem>>, vector<1x16x128xf32>
    %49 = vector.shape_cast %48 : vector<1x16x128xf32> to vector<16x128xf32>
    %50 = arith.addf %47, %49 : vector<16x128xf32>
    %cst_54 = arith.constant 0.000000e+00 : f32
    %51 = vector.broadcast %cst_54 : f32 to vector<16x128xf32>
    %52 = arith.maximumf %50, %51 : vector<16x128xf32>
    %c0_55 = arith.constant 0 : index
    %c0_56 = arith.constant 0 : index
    %c0_57 = arith.constant 0 : index
    %53 = vector.load %arg8[%c0_55, %c0_56, %c0_57] : memref<1x16x128xf32, #tpu.memory_space<vmem>>, vector<1x16x128xf32>
    %54 = vector.shape_cast %53 : vector<1x16x128xf32> to vector<16x128xf32>
    %55 = vector.shape_cast %52 : vector<16x128xf32> to vector<1x16x128xf32>
    tpu.vector_store %arg8[%c0_55, %c0_56, %c0_57], %55 {strides = array<i32>} : memref<1x16x128xf32, #tpu.memory_space<vmem>>, vector<1x16x128xf32>,
    return
  }
  func.func @transform_0(%arg0: i32) -> (i32, i32, i32) {
    %c0_i32 = arith.constant 0 : i32
    %c0_i32_0 = arith.constant 0 : i32
    %c0_i32_1 = arith.constant 0 : i32
    return %arg0, %c0_i32, %c0_i32_0 : i32, i32, i32
  }
  func.func @transform_1(%arg0: i32) -> (i32, i32, i32) {
    %c0_i32 = arith.constant 0 : i32
    %c0_i32_0 = arith.constant 0 : i32
    %c0_i32_1 = arith.constant 0 : i32
    %c0_i32_2 = arith.constant 0 : i32
    return %c0_i32, %c0_i32_0, %c0_i32_1 : i32, i32, i32
  }
  func.func @transform_2(%arg0: i32) -> (i32, i32, i32) {
    %c0_i32 = arith.constant 0 : i32
    %c0_i32_0 = arith.constant 0 : i32
    %c0_i32_1 = arith.constant 0 : i32
    %c0_i32_2 = arith.constant 0 : i32
    return %c0_i32, %c0_i32_0, %c0_i32_1 : i32, i32, i32
  }
  func.func @transform_3(%arg0: i32) -> (i32, i32) {
    %c0_i32 = arith.constant 0 : i32
    %c0_i32_0 = arith.constant 0 : i32
    %c0_i32_1 = arith.constant 0 : i32
    return %c0_i32, %c0_i32_0 : i32, i32
  }
  func.func @transform_4(%arg0: i32) -> (i32, i32) {
    %c0_i32 = arith.constant 0 : i32
    %c0_i32_0 = arith.constant 0 : i32
    %c0_i32_1 = arith.constant 0 : i32
    return %c0_i32, %c0_i32_0 : i32, i32
  }
  func.func @transform_5(%arg0: i32) -> (i32, i32) {
    %c0_i32 = arith.constant 0 : i32
    %c0_i32_0 = arith.constant 0 : i32
    %c0_i32_1 = arith.constant 0 : i32
    return %c0_i32, %c0_i32_0 : i32, i32
  }
  func.func @transform_6(%arg0: i32) -> (i32, i32) {
    %c0_i32 = arith.constant 0 : i32
    %c0_i32_0 = arith.constant 0 : i32
    %c0_i32_1 = arith.constant 0 : i32
    return %c0_i32, %c0_i32_0 : i32, i32
  }
  func.func @transform_7(%arg0: i32) -> (i32, i32, i32) {
    %c0_i32 = arith.constant 0 : i32
    %c0_i32_0 = arith.constant 0 : i32
    %c0_i32_1 = arith.constant 0 : i32
    return %arg0, %c0_i32, %c0_i32_0 : i32, i32, i32
  }
}

</mosaic_0001>

<llo_original>
// kernel: tpu_custom_call.1
$region0: #{tpu_custom_call.1}
  #allocation0 [shape = 'u32[]', space=smem, size = 0x4, offset = 0x4, fixed_abs, tag = 'smem constant byte address 0x4 - core index']
  #allocation1 [shape = 'u32[144,128]{1,0:T(1,128)}', space=vmem, size = 0x12000, scoped, tag = 'internal scratch']
  #allocation2 [shape = 'f32[18,128]{1,0:T(8,128)}', space=vmem, size = 0x3000, scoped, tag = 'scratch operand']
  %s0 = inlined_call_operand.hbm [shape: f32[2,16,128], index: 0, kind: input, shape index: {}]
  %s1 = inlined_call_operand.hbm [shape: f32[3,128,128], index: 1, kind: input, shape index: {}]
  %s2 = inlined_call_operand.hbm [shape: f32[3,128,128], index: 2, kind: input, shape index: {}]
  %s3 = inlined_call_operand.vmem [shape: f32[1,128], index: 3, kind: input, shape index: {}]
  %s4 = inlined_call_operand.vmem [shape: f32[1,128], index: 4, kind: input, shape index: {}]
  %s5 = inlined_call_operand.vmem [shape: f32[1,128], index: 5, kind: input, shape index: {}]
  %s6 = inlined_call_operand.vmem [shape: f32[1,128], index: 6, kind: input, shape index: {}]
  %s7 = inlined_call_operand.hbm [shape: f32[2,16,128], index: 7, kind: output, shape index: {}]
  %s8 = sld [smem:[#allocation0]]
  $region73: #{tpu_custom_call.1} parent=0
    _
  %s10 = ssub.s32 1, %s8
  %s11 = scalar_select 0, %s10, %s8
  $region1: #{tpu_custom_call.1} parent=0
    #allocation3 [shape = 'u8[16384]{0}', space=vmem, size = 0x4000, scoped, tag = 'input window, operand 0']
    #allocation4 [shape = 's32[2]{0}', space=sflag, size = 0x8, scoped, tag = 'scoped memory for tpu_custom_call.1']
    #allocation5 [shape = 's32[2]{0}', space=sflag, size = 0x8, scoped, tag = 'scoped memory for tpu_custom_call.1']
    #allocation6 [shape = 'u8[196608]{0}', space=vmem, size = 0x30000, scoped, tag = 'input window, operand 1, single buffered']
    #allocation7 [shape = 's32[1]{0}', space=sflag, size = 0x4, scoped, tag = 'scoped memory for tpu_custom_call.1']
    #allocation8 [shape = 'u8[196608]{0}', space=vmem, size = 0x30000, scoped, tag = 'input window, operand 2, single buffered']
    #allocation9 [shape = 'u8[16384]{0}', space=vmem, size = 0x4000, scoped, tag = 'output window, operand 0']
    %12 = vsyncpa [#allocation4], 0
    %s13 = scalar_lea.sflag [#allocation4], 1
    %14 = vsyncpa %s13, 0
    %15 = vsyncpa [#allocation7], 0
    %16 = vsyncpa [#allocation5], 0
    %s17 = scalar_lea.sflag [#allocation5], 1
    %18 = vsyncpa %s17, 0
    loop: start=0, step=1, limit=4
    $region2: #{tpu_custom_call.1} parent=1 // loop_pre_header
      _
    $region3: #{tpu_custom_call.1} parent=1 // loop_header
      %s20 = sphi 0, %s24
      %p21 = scmp.ge.s32.totalorder %s20, 4
      %s30 = sphi 0, %s32
      %s33 = sphi 0, %s30
      %s34 = sphi 0, %s33
      %s50 = sphi 0, %s34
      %s54 = sphi 0, %s54
      %s56 = sphi 0, %s54
      %s57 = sphi 0, %s56
      %s71 = sphi 0, %s57
      %s75 = sphi 0, %s75
      %s77 = sphi 0, %s75
      %s78 = sphi 0, %s77
      %s92 = sphi 0, %s78
      %s96 = sphi 0, %s96
      %s98 = sphi 0, %s96
      %s99 = sphi 0, %s98
      %s113 = sphi 0, %s99
      %s117 = sphi 0, %s117
      %s119 = sphi 0, %s117
      %s120 = sphi 0, %s119
      %s134 = sphi 0, %s120
      %s138 = sphi 0, %s138
      %s140 = sphi 0, %s138
      %s141 = sphi 0, %s140
      %s155 = sphi 0, %s141
      %s159 = sphi 0, %s159
      %s161 = sphi 0, %s159
      %s162 = sphi 0, %s161
      %s176 = sphi 0, %s162
      %s182 = sphi 0, %s184
      %s185 = sphi 0, %s182
      %s186 = sphi 0, %s185
      %s202 = sphi 0, %s186
    $region4: #{tpu_custom_call.1} parent=1 // loop_header_branch
      %23 = sbr.rel (%p21) target = $region8
    $region5: #{tpu_custom_call.1} parent=1 // loop_body
      %s25 = ssub.s32 %s20, 1
      %s26 = ssub.s32 %s20, 2
      %s27 = sadd.s32 %s20, 1
      %s28 = ssub.s32 %s20, %s27
      %p29 = scmp.eq.s32.totalorder %s28, 0
      %s31 = sadd.s32 %s30, 1
      %s32 = scalar_select %p29, %s30, %s31
      %p35 = pneg %p29
      %p36 = scmp.eq.s32.totalorder %s20, 1
      %p37 = por %p35, %p36
      %p38 = scmp.ne.s32.totalorder %s30, %s33
      %p39 = scmp.eq.s32.totalorder %s20, 0
      %p40 = por %p38, %p39
      %p41 = scmp.ne.s32.totalorder %s30, %s33
      %p42 = scmp.eq.s32.totalorder %s25, 1
      %p43 = por %p41, %p42
      %p44 = scmp.ne.s32.totalorder %s33, %s34
      %p45 = scmp.eq.s32.totalorder %s25, 0
      %p46 = por %p44, %p45
      %p47 = scmp.ne.s32.totalorder %s33, %s34
      %p48 = scmp.eq.s32.totalorder %s26, 1
      %p49 = por %p47, %p48
      %p51 = scmp.ne.s32.totalorder %s34, %s50
      %p52 = scmp.eq.s32.totalorder %s26, 0
      %p53 = por %p51, %p52
      %s55 = sadd.s32 %s54, 1
      %p58 = scmp.eq.s32.totalorder %s20, 1
      %p59 = scmp.ne.s32.totalorder %s54, %s56
      %p60 = scmp.eq.s32.totalorder %s20, 0
      %p61 = por %p59, %p60
      %p62 = scmp.ne.s32.totalorder %s54, %s56
      %p63 = scmp.eq.s32.totalorder %s25, 1
      %p64 = por %p62, %p63
      %p65 = scmp.ne.s32.totalorder %s56, %s57
      %p66 = scmp.eq.s32.totalorder %s25, 0
      %p67 = por %p65, %p66
      %p68 = scmp.ne.s32.totalorder %s56, %s57
      %p69 = scmp.eq.s32.totalorder %s26, 1
      %p70 = por %p68, %p69
      %p72 = scmp.ne.s32.totalorder %s57, %s71
      %p73 = scmp.eq.s32.totalorder %s26, 0
      %p74 = por %p72, %p73
      %s76 = sadd.s32 %s75, 1
      %p79 = scmp.eq.s32.totalorder %s20, 1
      %p80 = scmp.ne.s32.totalorder %s75, %s77
      %p81 = scmp.eq.s32.totalorder %s20, 0
      %p82 = por %p80, %p81
      %p83 = scmp.ne.s32.totalorder %s75, %s77
      %p84 = scmp.eq.s32.totalorder %s25, 1
      %p85 = por %p83, %p84
      %p86 = scmp.ne.s32.totalorder %s77, %s78
      %p87 = scmp.eq.s32.totalorder %s25, 0
      %p88 = por %p86, %p87
      %p89 = scmp.ne.s32.totalorder %s77, %s78
      %p90 = scmp.eq.s32.totalorder %s26, 1
      %p91 = por %p89, %p90
      %p93 = scmp.ne.s32.totalorder %s78, %s92
      %p94 = scmp.eq.s32.totalorder %s26, 0
      %p95 = por %p93, %p94
      %s97 = sadd.s32 %s96, 1
      %p100 = scmp.eq.s32.totalorder %s20, 1
      %p101 = scmp.ne.s32.totalorder %s96, %s98
      %p102 = scmp.eq.s32.totalorder %s20, 0
      %p103 = por %p101, %p102
      %p104 = scmp.ne.s32.totalorder %s96, %s98
      %p105 = scmp.eq.s32.totalorder %s25, 1
      %p106 = por %p104, %p105
      %p107 = scmp.ne.s32.totalorder %s98, %s99
      %p108 = scmp.eq.s32.totalorder %s25, 0
      %p109 = por %p107, %p108
      %p110 = scmp.ne.s32.totalorder %s98, %s99
      %p111 = scmp.eq.s32.totalorder %s26, 1
      %p112 = por %p110, %p111
      %p114 = scmp.ne.s32.totalorder %s99, %s113
      %p115 = scmp.eq.s32.totalorder %s26, 0
      %p116 = por %p114, %p115
      %s118 = sadd.s32 %s117, 1
      %p121 = scmp.eq.s32.totalorder %s20, 1
      %p122 = scmp.ne.s32.totalorder %s117, %s119
      %p123 = scmp.eq.s32.totalorder %s20, 0
      %p124 = por %p122, %p123
      %p125 = scmp.ne.s32.totalorder %s117, %s119
      %p126 = scmp.eq.s32.totalorder %s25, 1
      %p127 = por %p125, %p126
      %p128 = scmp.ne.s32.totalorder %s119, %s120
      %p129 = scmp.eq.s32.totalorder %s25, 0
      %p130 = por %p128, %p129
      %p131 = scmp.ne.s32.totalorder %s119, %s120
      %p132 = scmp.eq.s32.totalorder %s26, 1
      %p133 = por %p131, %p132
      %p135 = scmp.ne.s32.totalorder %s120, %s134
      %p136 = scmp.eq.s32.totalorder %s26, 0
      %p137 = por %p135, %p136
      %s139 = sadd.s32 %s138, 1
      %p142 = scmp.eq.s32.totalorder %s20, 1
      %p143 = scmp.ne.s32.totalorder %s138, %s140
      %p144 = scmp.eq.s32.totalorder %s20, 0
      %p145 = por %p143, %p144
      %p146 = scmp.ne.s32.totalorder %s138, %s140
      %p147 = scmp.eq.s32.totalorder %s25, 1
      %p148 = por %p146, %p147
      %p149 = scmp.ne.s32.totalorder %s140, %s141
      %p150 = scmp.eq.s32.totalorder %s25, 0
      %p151 = por %p149, %p150
      %p152 = scmp.ne.s32.totalorder %s140, %s141
      %p153 = scmp.eq.s32.totalorder %s26, 1
      %p154 = por %p152, %p153
      %p156 = scmp.ne.s32.totalorder %s141, %s155
      %p157 = scmp.eq.s32.totalorder %s26, 0
      %p158 = por %p156, %p157
      %s160 = sadd.s32 %s159, 1
      %p163 = scmp.eq.s32.totalorder %s20, 1
      %p164 = scmp.ne.s32.totalorder %s159, %s161
      %p165 = scmp.eq.s32.totalorder %s20, 0
      %p166 = por %p164, %p165
      %p167 = scmp.ne.s32.totalorder %s159, %s161
      %p168 = scmp.eq.s32.totalorder %s25, 1
      %p169 = por %p167, %p168
      %p170 = scmp.ne.s32.totalorder %s161, %s162
      %p171 = scmp.eq.s32.totalorder %s25, 0
      %p172 = por %p170, %p171
      %p173 = scmp.ne.s32.totalorder %s161, %s162
      %p174 = scmp.eq.s32.totalorder %s26, 1
      %p175 = por %p173, %p174
      %p177 = scmp.ne.s32.totalorder %s162, %s176
      %p178 = scmp.eq.s32.totalorder %s26, 0
      %p179 = por %p177, %p178
      %s180 = ssub.s32 %s20, %s27
      %p181 = scmp.eq.s32.totalorder %s180, 0
      %s183 = sadd.s32 %s182, 1
      %s184 = scalar_select %p181, %s182, %s183
      %p187 = pneg %p181
      %p188 = scmp.eq.s32.totalorder %s20, 1
      %p189 = por %p187, %p188
      %p190 = scmp.ne.s32.totalorder %s182, %s185
      %p191 = scmp.eq.s32.totalorder %s20, 0
      %p192 = por %p190, %p191
      %p193 = scmp.ne.s32.totalorder %s182, %s185
      %p194 = scmp.eq.s32.totalorder %s25, 1
      %p195 = por %p193, %p194
      %p196 = scmp.ne.s32.totalorder %s185, %s186
      %p197 = scmp.eq.s32.totalorder %s25, 0
      %p198 = por %p196, %p197
      %p199 = scmp.ne.s32.totalorder %s185, %s186
      %p200 = scmp.eq.s32.totalorder %s26, 1
      %p201 = por %p199, %p200
      %p203 = scmp.ne.s32.totalorder %s186, %s202
      %p204 = scmp.eq.s32.totalorder %s26, 0
      %p205 = por %p203, %p204
      %p206 = scmp.le.s32.totalorder 1, %s20
      %p207 = scmp.lt.s32.totalorder %s20, 3
      %p208 = pnand %p206, %p207
      %p209 = pneg %p208
      // Predicated region
      $region9: #{tpu_custom_call.1} parent=5 // pred_check
        _
      $region10: #{tpu_custom_call.1} parent=5 // pred_check_branch
        %211 = sbr.rel (%p208) target = $region12
      $region11: #{tpu_custom_call.1} parent=5 // pred_region
        %s212 = ssub.s32 %s20, 1
        // Predicated region
        $region13: #{tpu_custom_call.1} parent=11 // pred_check
          %p213 = pneg %p67
        $region14: #{tpu_custom_call.1} parent=11 // pred_check_branch
          %215 = sbr.rel (%p213) target = $region16
        $region15: #{tpu_custom_call.1} parent=11 // pred_region
          %s217 = ssub.s32 6144, 6144
          %218 = vsyncadd [#allocation7], %s217
          %s219 = sshll.u32 [#allocation6], 4
          %s220 = int_to_ptr.vmem [resolvable:$true] %s219
          %225 = dma.hbm_to_vmem [thread:$0]  %s1, 6144, %s220, [#allocation7], 128, 128, 8
        $region16: #{tpu_custom_call.1} parent=11 // pred_fallthru
          _
        // Predicated region
        $region17: #{tpu_custom_call.1} parent=11 // pred_check
          %p226 = pneg %p88
        $region18: #{tpu_custom_call.1} parent=11 // pred_check_branch
          %228 = sbr.rel (%p226) target = $region20
        $region19: #{tpu_custom_call.1} parent=11 // pred_region
          %s230 = ssub.s32 6144, 6144
          %231 = vsyncadd [#allocation7], %s230
          %s232 = sshll.u32 [#allocation8], 4
          %s233 = int_to_ptr.vmem [resolvable:$true] %s232
          %238 = dma.hbm_to_vmem [thread:$0]  %s2, 6144, %s233, [#allocation7], 128, 128, 8
        $region20: #{tpu_custom_call.1} parent=11 // pred_fallthru
          _
        // Predicated region
        $region21: #{tpu_custom_call.1} parent=11 // pred_check
          %p239 = pneg %p109
        $region22: #{tpu_custom_call.1} parent=11 // pred_check_branch
          %241 = sbr.rel (%p239) target = $region24
        $region23: #{tpu_custom_call.1} parent=11 // pred_region
          _
        $region24: #{tpu_custom_call.1} parent=11 // pred_fallthru
          _
        // Predicated region
        $region25: #{tpu_custom_call.1} parent=11 // pred_check
          %p242 = pneg %p130
        $region26: #{tpu_custom_call.1} parent=11 // pred_check_branch
          %244 = sbr.rel (%p242) target = $region28
        $region27: #{tpu_custom_call.1} parent=11 // pred_region
          _
        $region28: #{tpu_custom_call.1} parent=11 // pred_fallthru
          _
        // Predicated region
        $region29: #{tpu_custom_call.1} parent=11 // pred_check
          %p245 = pneg %p151
        $region30: #{tpu_custom_call.1} parent=11 // pred_check_branch
          %247 = sbr.rel (%p245) target = $region32
        $region31: #{tpu_custom_call.1} parent=11 // pred_region
          _
        $region32: #{tpu_custom_call.1} parent=11 // pred_fallthru
          _
        // Predicated region
        $region33: #{tpu_custom_call.1} parent=11 // pred_check
          %p248 = pneg %p172
        $region34: #{tpu_custom_call.1} parent=11 // pred_check_branch
          %250 = sbr.rel (%p248) target = $region36
        $region35: #{tpu_custom_call.1} parent=11 // pred_region
          _
        $region36: #{tpu_custom_call.1} parent=11 // pred_fallthru
          _
      $region12: #{tpu_custom_call.1} parent=5 // pred_fallthru
        _
      %p251 = scmp.lt.s32.totalorder %s20, 2
      // Predicated region
      $region37: #{tpu_custom_call.1} parent=5 // pred_check
        %p252 = pneg %p251
      $region38: #{tpu_custom_call.1} parent=5 // pred_check_branch
        %254 = sbr.rel (%p252) target = $region40
      $region39: #{tpu_custom_call.1} parent=5 // pred_region
        // Predicated region
        $region41: #{tpu_custom_call.1} parent=39 // pred_check
          %p255 = pneg %p40
        $region42: #{tpu_custom_call.1} parent=39 // pred_check_branch
          %257 = sbr.rel (%p255) target = $region44
        $region43: #{tpu_custom_call.1} parent=39 // pred_region
          %s258 = sand.u32 %s30, 1
          %s259 = scalar_lea.sflag [#allocation4], %s258
          %s260 = sand.u32 %s30, 1
          %s261 = smul.addr %s260, 16
          %s262 = scalar_lea.vmem [#allocation3], %s261
          %s264 = ssub.s32 256, 256
          %265 = vsyncadd %s259, %s264
          %s266 = smul.addr %s20, 2
          %s267 = smul.addr %s266, 128
          %s268 = scalar_lea.hbm %s0, %s267
          %s269 = sshll.u32 %s262, 4
          %s270 = int_to_ptr.vmem [resolvable:$true] %s269
          %275 = dma.hbm_to_vmem [thread:$0]  %s268, 256, %s270, %s259, 128, 128, 8
        $region44: #{tpu_custom_call.1} parent=39 // pred_fallthru
          _
      $region40: #{tpu_custom_call.1} parent=5 // pred_fallthru
        _
      %p276 = scmp.le.s32.totalorder 1, %s20
      %p277 = scmp.lt.s32.totalorder %s20, 3
      %p278 = pnand %p276, %p277
      %p279 = pneg %p278
      // Predicated region
      $region45: #{tpu_custom_call.1} parent=5 // pred_check
        _
      $region46: #{tpu_custom_call.1} parent=5 // pred_check_branch
        %281 = sbr.rel (%p278) target = $region48
      $region47: #{tpu_custom_call.1} parent=5 // pred_region
        %s282 = ssub.s32 %s20, 1
        %s283 = sand.u32 %s33, 1
        %s284 = scalar_lea.sflag [#allocation4], %s283
        %s285 = sand.u32 %s33, 1
        %s286 = smul.addr %s285, 16
        %s287 = scalar_lea.vmem [#allocation3], %s286
        // Predicated region
        $region49: #{tpu_custom_call.1} parent=47 // pred_check
          %p288 = pneg %p46
        $region50: #{tpu_custom_call.1} parent=47 // pred_check_branch
          %290 = sbr.rel (%p288) target = $region52
        $region51: #{tpu_custom_call.1} parent=47 // pred_region
          %291 = dma.done %s284, 256
        $region52: #{tpu_custom_call.1} parent=47 // pred_fallthru
          _
        // Predicated region
        $region53: #{tpu_custom_call.1} parent=47 // pred_check
          %p292 = pneg %p67
        $region54: #{tpu_custom_call.1} parent=47 // pred_check_branch
          %294 = sbr.rel (%p292) target = $region56
        $region55: #{tpu_custom_call.1} parent=47 // pred_region
          %295 = dma.done [#allocation7], 6144
        $region56: #{tpu_custom_call.1} parent=47 // pred_fallthru
          _
        // Predicated region
        $region57: #{tpu_custom_call.1} parent=47 // pred_check
          %p296 = pneg %p88
        $region58: #{tpu_custom_call.1} parent=47 // pred_check_branch
          %298 = sbr.rel (%p296) target = $region60
        $region59: #{tpu_custom_call.1} parent=47 // pred_region
          %299 = dma.done [#allocation7], 6144
        $region60: #{tpu_custom_call.1} parent=47 // pred_fallthru
          _
        %s300 = sand.u32 %s33, 1
        %s301 = scalar_lea.sflag [#allocation4], %s300
        %s302 = sand.u32 %s33, 1
        %s303 = smul.addr %s302, 16
        %s304 = scalar_lea.vmem [#allocation3], %s303
        %p305 = pneg %p46
        %p306 = pneg %p43
        %p307 = pneg %p67
        %p308 = pneg %p64
        %p309 = pneg %p88
        %p310 = pneg %p85
        %p311 = pneg %p109
        %p312 = pneg %p106
        %p313 = pneg %p130
        %p314 = pneg %p127
        %p315 = pneg %p151
        %p316 = pneg %p148
        %p317 = pneg %p172
        %p318 = pneg %p169
        %p319 = pneg %p198
        %p320 = pneg %p195
        %s321 = sand.u32 %s185, 1
        %s322 = scalar_lea.sflag [#allocation5], %s321
        %s323 = sand.u32 %s185, 1
        %s324 = smul.addr %s323, 16
        %s325 = scalar_lea.vmem [#allocation9], %s324
        %326 = vst [vmem:[#allocation2] sm:$0xff] 0.0
        %327 = vst [vmem:[#allocation2 + $0x8] sm:$0xff] 0.0
        %328 = vst [vmem:[#allocation2 + $0x10] sm:$0x3] 0.0
        %v329 = vld [vmem:[%s287] sm:$0xff]
        %v330 = vld [vmem:[%s287 + $0x8] sm:$0xff]
        %331 = vst [vmem:[#allocation2 + $0x1] sm:$0xff] %v329
        %332 = vst [vmem:[#allocation2 + $0x9] sm:$0xff] %v330
        %v333 = vld [vmem:[#allocation2] sm:$0xff]
        %v334 = vld [vmem:[#allocation2 + $0x8] sm:$0xff]
        %v335 = vld [vmem:[#allocation6] sm:$0xff]
        %v336 = vld [vmem:[#allocation6 + $0x8] sm:$0xff]
        %v337 = vld [vmem:[#allocation6 + $0x10] sm:$0xff]
        %v338 = vld [vmem:[#allocation6 + $0x18] sm:$0xff]
        %v339 = vld [vmem:[#allocation6 + $0x20] sm:$0xff]
        %v340 = vld [vmem:[#allocation6 + $0x28] sm:$0xff]
        %v341 = vld [vmem:[#allocation6 + $0x30] sm:$0xff]
        %v342 = vld [vmem:[#allocation6 + $0x38] sm:$0xff]
        %v343 = vld [vmem:[#allocation6 + $0x40] sm:$0xff]
        %v344 = vld [vmem:[#allocation6 + $0x48] sm:$0xff]
        %v345 = vld [vmem:[#allocation6 + $0x50] sm:$0xff]
        %v346 = vld [vmem:[#allocation6 + $0x58] sm:$0xff]
        %v347 = vld [vmem:[#allocation6 + $0x60] sm:$0xff]
        %v348 = vld [vmem:[#allocation6 + $0x68] sm:$0xff]
        %v349 = vld [vmem:[#allocation6 + $0x70] sm:$0xff]
        %v350 = vld [vmem:[#allocation6 + $0x78] sm:$0xff]
        %v351 = vld [vmem:[#allocation2 + $0x1] sm:$0xff]
        %v352 = vld [vmem:[#allocation2 + $0x9] sm:$0xff]
        %s353 = scalar_lea.vmem [#allocation6], 128
        %v354 = vld [vmem:[%s353] sm:$0xff]
        %v355 = vld [vmem:[%s353 + $0x8] sm:$0xff]
        %v356 = vld [vmem:[%s353 + $0x10] sm:$0xff]
        %v357 = vld [vmem:[%s353 + $0x18] sm:$0xff]
        %v358 = vld [vmem:[%s353 + $0x20] sm:$0xff]
        %v359 = vld [vmem:[%s353 + $0x28] sm:$0xff]
        %v360 = vld [vmem:[%s353 + $0x30] sm:$0xff]
        %v361 = vld [vmem:[%s353 + $0x38] sm:$0xff]
        %v362 = vld [vmem:[%s353 + $0x40] sm:$0xff]
        %v363 = vld [vmem:[%s353 + $0x48] sm:$0xff]
        %v364 = vld [vmem:[%s353 + $0x50] sm:$0xff]
        %v365 = vld [vmem:[%s353 + $0x58] sm:$0xff]
        %v366 = vld [vmem:[%s353 + $0x60] sm:$0xff]
        %v367 = vld [vmem:[%s353 + $0x68] sm:$0xff]
        %v368 = vld [vmem:[%s353 + $0x70] sm:$0xff]
        %v369 = vld [vmem:[%s353 + $0x78] sm:$0xff]
        %370 = vmatprep.subr.mxu0 0.0
        %371 = vmatpush1.msra.mxu0 %v354
        %372 = vmatprep.subr.mxu0 0.0
        %373 = vmatpush1.msra.mxu0 %v355
        %374 = vmatprep.subr.mxu0 0.0
        %375 = vmatpush1.msra.mxu0 %v356
        %376 = vmatprep.subr.mxu0 0.0
        %377 = vmatpush1.msra.mxu0 %v357
        %378 = vmatprep.subr.mxu0 0.0
        %379 = vmatpush1.msra.mxu0 %v358
        %380 = vmatprep.subr.mxu0 0.0
        %381 = vmatpush1.msra.mxu0 %v359
        %382 = vmatprep.subr.mxu0 0.0
        %383 = vmatpush1.msra.mxu0 %v360
        %384 = vmatprep.subr.mxu0 0.0
        %385 = vmatpush1.msra.mxu0 %v361
        %386 = vmatprep.subr.mxu0 0.0
        %387 = vmatpush1.msra.mxu0 %v362
        %388 = vmatprep.subr.mxu0 0.0
        %389 = vmatpush1.msra.mxu0 %v363
        %390 = vmatprep.subr.mxu0 0.0
        %391 = vmatpush1.msra.mxu0 %v364
        %392 = vmatprep.subr.mxu0 0.0
        %393 = vmatpush1.msra.mxu0 %v365
        %394 = vmatprep.subr.mxu0 0.0
        %395 = vmatpush1.msra.mxu0 %v366
        %396 = vmatprep.subr.mxu0 0.0
        %397 = vmatpush1.msra.mxu0 %v367
        %398 = vmatprep.subr.mxu0 0.0
        %399 = vmatpush1.msra.mxu0 %v368
        %400 = vmatprep.subr.mxu0 0.0
        %401 = vmatpush1.msra.mxu0 %v369
        %402 = vmatprep.subr.mxu0 0.0
        %403 = vmatpush1.msra.mxu0 0.0
        %404 = vmatprep.subr.mxu0 0.0
        %405 = vmatpush1.msra.mxu0 0.0
        %406 = vmatprep.subr.mxu0 0.0
        %407 = vmatpush1.msra.mxu0 0.0
        %408 = vmatprep.subr.mxu0 0.0
        %409 = vmatpush1.msra.mxu0 0.0
        %410 = vmatprep.subr.mxu0 0.0
        %411 = vmatpush1.msra.mxu0 0.0
        %412 = vmatprep.subr.mxu0 0.0
        %413 = vmatpush1.msra.mxu0 0.0
        %414 = vmatprep.subr.mxu0 0.0
        %415 = vmatpush1.msra.mxu0 0.0
        %416 = vmatprep.subr.mxu0 0.0
        %417 = vmatpush1.msra.mxu0 0.0
        %418 = vmatprep.subr.mxu0 0.0
        %419 = vmatpush1.msra.mxu0 0.0
        %420 = vmatprep.subr.mxu0 0.0
        %421 = vmatpush1.msra.mxu0 0.0
        %422 = vmatprep.subr.mxu0 0.0
        %423 = vmatpush1.msra.mxu0 0.0
        %424 = vmatprep.subr.mxu0 0.0
        %425 = vmatpush1.msra.mxu0 0.0
        %426 = vmatprep.subr.mxu0 0.0
        %427 = vmatpush1.msra.mxu0 0.0
        %428 = vmatprep.subr.mxu0 0.0
        %429 = vmatpush1.msra.mxu0 0.0
        %430 = vmatprep.subr.mxu0 0.0
        %431 = vmatpush1.msra.mxu0 0.0
        %432 = vmatprep.subr.mxu0 0.0
        %433 = vmatpush1.msra.mxu0 0.0
        %434 = vmatprep.mubr.f32.mxu0 0.0
        %435 = vmatmul.mubr.f32.gmra.mrb[0].mxu0 %v351
        %v436 = vpop.f32.mrb[0].mxu0
        %v437 = vadd.f32 0.0, %v436
        %v438 = vpop.f32.mrb[0].mxu0
        %439 = vmatprep.mubr.f32.mxu0 0.0
        %440 = vmatmul.mubr.f32.gmra.mrb[0].mxu0 %v352
        %v441 = vpop.f32.mrb[0].mxu0
        %v442 = vadd.f32 0.0, %v441
        %v443 = vpop.f32.mrb[0].mxu0
        %444 = vdwg.mxu0
        %445 = vmatprep.subr.mxu0 0.0
        %446 = vmatpush1.msra.mxu0 %v335
        %447 = vmatprep.subr.mxu0 0.0
        %448 = vmatpush1.msra.mxu0 %v336
        %449 = vmatprep.subr.mxu0 0.0
        %450 = vmatpush1.msra.mxu0 %v337
        %451 = vmatprep.subr.mxu0 0.0
        %452 = vmatpush1.msra.mxu0 %v338
        %453 = vmatprep.subr.mxu0 0.0
        %454 = vmatpush1.msra.mxu0 %v339
        %455 = vmatprep.subr.mxu0 0.0
        %456 = vmatpush1.msra.mxu0 %v340
        %457 = vmatprep.subr.mxu0 0.0
        %458 = vmatpush1.msra.mxu0 %v341
        %459 = vmatprep.subr.mxu0 0.0
        %460 = vmatpush1.msra.mxu0 %v342
        %461 = vmatprep.subr.mxu0 0.0
        %462 = vmatpush1.msra.mxu0 %v343
        %463 = vmatprep.subr.mxu0 0.0
        %464 = vmatpush1.msra.mxu0 %v344
        %465 = vmatprep.subr.mxu0 0.0
        %466 = vmatpush1.msra.mxu0 %v345
        %467 = vmatprep.subr.mxu0 0.0
        %468 = vmatpush1.msra.mxu0 %v346
        %469 = vmatprep.subr.mxu0 0.0
        %470 = vmatpush1.msra.mxu0 %v347
        %471 = vmatprep.subr.mxu0 0.0
        %472 = vmatpush1.msra.mxu0 %v348
        %473 = vmatprep.subr.mxu0 0.0
        %474 = vmatpush1.msra.mxu0 %v349
        %475 = vmatprep.subr.mxu0 0.0
        %476 = vmatpush1.msra.mxu0 %v350
        %477 = vmatprep.subr.mxu0 0.0
        %478 = vmatpush1.msra.mxu0 0.0
        %479 = vmatprep.subr.mxu0 0.0
        %480 = vmatpush1.msra.mxu0 0.0
        %481 = vmatprep.subr.mxu0 0.0
        %482 = vmatpush1.msra.mxu0 0.0
        %483 = vmatprep.subr.mxu0 0.0
        %484 = vmatpush1.msra.mxu0 0.0
        %485 = vmatprep.subr.mxu0 0.0
        %486 = vmatpush1.msra.mxu0 0.0
        %487 = vmatprep.subr.mxu0 0.0
        %488 = vmatpush1.msra.mxu0 0.0
        %489 = vmatprep.subr.mxu0 0.0
        %490 = vmatpush1.msra.mxu0 0.0
        %491 = vmatprep.subr.mxu0 0.0
        %492 = vmatpush1.msra.mxu0 0.0
        %493 = vmatprep.subr.mxu0 0.0
        %494 = vmatpush1.msra.mxu0 0.0
        %495 = vmatprep.subr.mxu0 0.0
        %496 = vmatpush1.msra.mxu0 0.0
        %497 = vmatprep.subr.mxu0 0.0
        %498 = vmatpush1.msra.mxu0 0.0
        %499 = vmatprep.subr.mxu0 0.0
        %500 = vmatpush1.msra.mxu0 0.0
        %501 = vmatprep.subr.mxu0 0.0
        %502 = vmatpush1.msra.mxu0 0.0
        %503 = vmatprep.subr.mxu0 0.0
        %504 = vmatpush1.msra.mxu0 0.0
        %505 = vmatprep.subr.mxu0 0.0
        %506 = vmatpush1.msra.mxu0 0.0
        %507 = vmatprep.subr.mxu0 0.0
        %508 = vmatpush1.msra.mxu0 0.0
        %509 = vmatprep.mubr.f32.mxu0 0.0
        %510 = vmatmul.mubr.f32.gmra.mrb[0].mxu0 %v333
        %v511 = vpop.f32.mrb[0].mxu0
        %v512 = vadd.f32 %v437, %v511
        %v513 = vpop.f32.mrb[0].mxu0
        %514 = vmatprep.mubr.f32.mxu0 0.0
        %515 = vmatmul.mubr.f32.gmra.mrb[0].mxu0 %v334
        %v516 = vpop.f32.mrb[0].mxu0
        %v517 = vadd.f32 %v442, %v516
        %v518 = vpop.f32.mrb[0].mxu0
        %519 = vdwg.mxu0
        %v520 = vld [vmem:[#allocation2 + $0x2] sm:$0xff]
        %v521 = vld [vmem:[#allocation2 + $0xa] sm:$0xff]
        %s522 = scalar_lea.vmem [#allocation6], 256
        %v523 = vld [vmem:[%s522] sm:$0xff]
        %v524 = vld [vmem:[%s522 + $0x8] sm:$0xff]
        %v525 = vld [vmem:[%s522 + $0x10] sm:$0xff]
        %v526 = vld [vmem:[%s522 + $0x18] sm:$0xff]
        %v527 = vld [vmem:[%s522 + $0x20] sm:$0xff]
        %v528 = vld [vmem:[%s522 + $0x28] sm:$0xff]
        %v529 = vld [vmem:[%s522 + $0x30] sm:$0xff]
        %v530 = vld [vmem:[%s522 + $0x38] sm:$0xff]
        %v531 = vld [vmem:[%s522 + $0x40] sm:$0xff]
        %v532 = vld [vmem:[%s522 + $0x48] sm:$0xff]
        %v533 = vld [vmem:[%s522 + $0x50] sm:$0xff]
        %v534 = vld [vmem:[%s522 + $0x58] sm:$0xff]
        %v535 = vld [vmem:[%s522 + $0x60] sm:$0xff]
        %v536 = vld [vmem:[%s522 + $0x68] sm:$0xff]
        %v537 = vld [vmem:[%s522 + $0x70] sm:$0xff]
        %v538 = vld [vmem:[%s522 + $0x78] sm:$0xff]
        %539 = vmatprep.subr.mxu0 0.0
        %540 = vmatpush1.msra.mxu0 %v523
        %541 = vmatprep.subr.mxu0 0.0
        %542 = vmatpush1.msra.mxu0 %v524
        %543 = vmatprep.subr.mxu0 0.0
        %544 = vmatpush1.msra.mxu0 %v525
        %545 = vmatprep.subr.mxu0 0.0
        %546 = vmatpush1.msra.mxu0 %v526
        %547 = vmatprep.subr.mxu0 0.0
        %548 = vmatpush1.msra.mxu0 %v527
        %549 = vmatprep.subr.mxu0 0.0
        %550 = vmatpush1.msra.mxu0 %v528
        %551 = vmatprep.subr.mxu0 0.0
        %552 = vmatpush1.msra.mxu0 %v529
        %553 = vmatprep.subr.mxu0 0.0
        %554 = vmatpush1.msra.mxu0 %v530
        %555 = vmatprep.subr.mxu0 0.0
        %556 = vmatpush1.msra.mxu0 %v531
        %557 = vmatprep.subr.mxu0 0.0
        %558 = vmatpush1.msra.mxu0 %v532
        %559 = vmatprep.subr.mxu0 0.0
        %560 = vmatpush1.msra.mxu0 %v533
        %561 = vmatprep.subr.mxu0 0.0
        %562 = vmatpush1.msra.mxu0 %v534
        %563 = vmatprep.subr.mxu0 0.0
        %564 = vmatpush1.msra.mxu0 %v535
        %565 = vmatprep.subr.mxu0 0.0
        %566 = vmatpush1.msra.mxu0 %v536
        %567 = vmatprep.subr.mxu0 0.0
        %568 = vmatpush1.msra.mxu0 %v537
        %569 = vmatprep.subr.mxu0 0.0
        %570 = vmatpush1.msra.mxu0 %v538
        %571 = vmatprep.subr.mxu0 0.0
        %572 = vmatpush1.msra.mxu0 0.0
        %573 = vmatprep.subr.mxu0 0.0
        %574 = vmatpush1.msra.mxu0 0.0
        %575 = vmatprep.subr.mxu0 0.0
        %576 = vmatpush1.msra.mxu0 0.0
        %577 = vmatprep.subr.mxu0 0.0
        %578 = vmatpush1.msra.mxu0 0.0
        %579 = vmatprep.subr.mxu0 0.0
        %580 = vmatpush1.msra.mxu0 0.0
        %581 = vmatprep.subr.mxu0 0.0
        %582 = vmatpush1.msra.mxu0 0.0
        %583 = vmatprep.subr.mxu0 0.0
        %584 = vmatpush1.msra.mxu0 0.0
        %585 = vmatprep.subr.mxu0 0.0
        %586 = vmatpush1.msra.mxu0 0.0
        %587 = vmatprep.subr.mxu0 0.0
        %588 = vmatpush1.msra.mxu0 0.0
        %589 = vmatprep.subr.mxu0 0.0
        %590 = vmatpush1.msra.mxu0 0.0
        %591 = vmatprep.subr.mxu0 0.0
        %592 = vmatpush1.msra.mxu0 0.0
        %593 = vmatprep.subr.mxu0 0.0
        %594 = vmatpush1.msra.mxu0 0.0
        %595 = vmatprep.subr.mxu0 0.0
        %596 = vmatpush1.msra.mxu0 0.0
        %597 = vmatprep.subr.mxu0 0.0
        %598 = vmatpush1.msra.mxu0 0.0
        %599 = vmatprep.subr.mxu0 0.0
        %600 = vmatpush1.msra.mxu0 0.0
        %601 = vmatprep.subr.mxu0 0.0
        %602 = vmatpush1.msra.mxu0 0.0
        %603 = vmatprep.mubr.f32.mxu0 0.0
        %604 = vmatmul.mubr.f32.gmra.mrb[0].mxu0 %v520
        %v605 = vpop.f32.mrb[0].mxu0
        %v606 = vadd.f32 0.0, %v605
        %v607 = vpop.f32.mrb[0].mxu0
        %608 = vmatprep.mubr.f32.mxu0 0.0
        %609 = vmatmul.mubr.f32.gmra.mrb[0].mxu0 %v521
        %v610 = vpop.f32.mrb[0].mxu0
        %v611 = vadd.f32 0.0, %v610
        %v612 = vpop.f32.mrb[0].mxu0
        %613 = vdwg.mxu0
        %v614 = vadd.f32 %v512, %v606
        %v615 = vadd.f32 %v517, %v611
        %v616 = vld [vmem:[%s3] sm:$0x1]
        %v618 = vlaneseq
        %v619 = vshrl.u32 %v618, 7
        %v620 = vsub.s32 0, %v619
        %v621 = vrot.slane %v616, %v620
        %v623 = vmul.f32 %v614, %v621
        %v624 = vmul.f32 %v615, %v621
        %v625 = vld [vmem:[%s4] sm:$0x1]
        %v627 = vlaneseq
        %v628 = vshrl.u32 %v627, 7
        %v629 = vsub.s32 0, %v628
        %v630 = vrot.slane %v625, %v629
        %v632 = vadd.f32 %v623, %v630
        %v633 = vadd.f32 %v624, %v630
        %v634 = vmax.f32 %v632, 0.0
        %v635 = vmax.f32 %v633, 0.0
        %636 = vst [vmem:[#allocation2 + $0x1] sm:$0xff] %v634
        %637 = vst [vmem:[#allocation2 + $0x9] sm:$0xff] %v635
        %v638 = vld [vmem:[#allocation2] sm:$0xff]
        %v639 = vld [vmem:[#allocation2 + $0x8] sm:$0xff]
        %v640 = vld [vmem:[#allocation8] sm:$0xff]
        %v641 = vld [vmem:[#allocation8 + $0x8] sm:$0xff]
        %v642 = vld [vmem:[#allocation8 + $0x10] sm:$0xff]
        %v643 = vld [vmem:[#allocation8 + $0x18] sm:$0xff]
        %v644 = vld [vmem:[#allocation8 + $0x20] sm:$0xff]
        %v645 = vld [vmem:[#allocation8 + $0x28] sm:$0xff]
        %v646 = vld [vmem:[#allocation8 + $0x30] sm:$0xff]
        %v647 = vld [vmem:[#allocation8 + $0x38] sm:$0xff]
        %v648 = vld [vmem:[#allocation8 + $0x40] sm:$0xff]
        %v649 = vld [vmem:[#allocation8 + $0x48] sm:$0xff]
        %v650 = vld [vmem:[#allocation8 + $0x50] sm:$0xff]
        %v651 = vld [vmem:[#allocation8 + $0x58] sm:$0xff]
        %v652 = vld [vmem:[#allocation8 + $0x60] sm:$0xff]
        %v653 = vld [vmem:[#allocation8 + $0x68] sm:$0xff]
        %v654 = vld [vmem:[#allocation8 + $0x70] sm:$0xff]
        %v655 = vld [vmem:[#allocation8 + $0x78] sm:$0xff]
        %v656 = vld [vmem:[#allocation2 + $0x1] sm:$0xff]
        %v657 = vld [vmem:[#allocation2 + $0x9] sm:$0xff]
        %s658 = scalar_lea.vmem [#allocation8], 128
        %v659 = vld [vmem:[%s658] sm:$0xff]
        %v660 = vld [vmem:[%s658 + $0x8] sm:$0xff]
        %v661 = vld [vmem:[%s658 + $0x10] sm:$0xff]
        %v662 = vld [vmem:[%s658 + $0x18] sm:$0xff]
        %v663 = vld [vmem:[%s658 + $0x20] sm:$0xff]
        %v664 = vld [vmem:[%s658 + $0x28] sm:$0xff]
        %v665 = vld [vmem:[%s658 + $0x30] sm:$0xff]
        %v666 = vld [vmem:[%s658 + $0x38] sm:$0xff]
        %v667 = vld [vmem:[%s658 + $0x40] sm:$0xff]
        %v668 = vld [vmem:[%s658 + $0x48] sm:$0xff]
        %v669 = vld [vmem:[%s658 + $0x50] sm:$0xff]
        %v670 = vld [vmem:[%s658 + $0x58] sm:$0xff]
        %v671 = vld [vmem:[%s658 + $0x60] sm:$0xff]
        %v672 = vld [vmem:[%s658 + $0x68] sm:$0xff]
        %v673 = vld [vmem:[%s658 + $0x70] sm:$0xff]
        %v674 = vld [vmem:[%s658 + $0x78] sm:$0xff]
        %675 = vmatprep.subr.mxu0 0.0
        %676 = vmatpush1.msra.mxu0 %v659
        %677 = vmatprep.subr.mxu0 0.0
        %678 = vmatpush1.msra.mxu0 %v660
        %679 = vmatprep.subr.mxu0 0.0
        %680 = vmatpush1.msra.mxu0 %v661
        %681 = vmatprep.subr.mxu0 0.0
        %682 = vmatpush1.msra.mxu0 %v662
        %683 = vmatprep.subr.mxu0 0.0
        %684 = vmatpush1.msra.mxu0 %v663
        %685 = vmatprep.subr.mxu0 0.0
        %686 = vmatpush1.msra.mxu0 %v664
        %687 = vmatprep.subr.mxu0 0.0
        %688 = vmatpush1.msra.mxu0 %v665
        %689 = vmatprep.subr.mxu0 0.0
        %690 = vmatpush1.msra.mxu0 %v666
        %691 = vmatprep.subr.mxu0 0.0
        %692 = vmatpush1.msra.mxu0 %v667
        %693 = vmatprep.subr.mxu0 0.0
        %694 = vmatpush1.msra.mxu0 %v668
        %695 = vmatprep.subr.mxu0 0.0
        %696 = vmatpush1.msra.mxu0 %v669
        %697 = vmatprep.subr.mxu0 0.0
        %698 = vmatpush1.msra.mxu0 %v670
        %699 = vmatprep.subr.mxu0 0.0
        %700 = vmatpush1.msra.mxu0 %v671
        %701 = vmatprep.subr.mxu0 0.0
        %702 = vmatpush1.msra.mxu0 %v672
        %703 = vmatprep.subr.mxu0 0.0
        %704 = vmatpush1.msra.mxu0 %v673
        %705 = vmatprep.subr.mxu0 0.0
        %706 = vmatpush1.msra.mxu0 %v674
        %707 = vmatprep.subr.mxu0 0.0
        %708 = vmatpush1.msra.mxu0 0.0
        %709 = vmatprep.subr.mxu0 0.0
        %710 = vmatpush1.msra.mxu0 0.0
        %711 = vmatprep.subr.mxu0 0.0
        %712 = vmatpush1.msra.mxu0 0.0
        %713 = vmatprep.subr.mxu0 0.0
        %714 = vmatpush1.msra.mxu0 0.0
        %715 = vmatprep.subr.mxu0 0.0
        %716 = vmatpush1.msra.mxu0 0.0
        %717 = vmatprep.subr.mxu0 0.0
        %718 = vmatpush1.msra.mxu0 0.0
        %719 = vmatprep.subr.mxu0 0.0
        %720 = vmatpush1.msra.mxu0 0.0
        %721 = vmatprep.subr.mxu0 0.0
        %722 = vmatpush1.msra.mxu0 0.0
        %723 = vmatprep.subr.mxu0 0.0
        %724 = vmatpush1.msra.mxu0 0.0
        %725 = vmatprep.subr.mxu0 0.0
        %726 = vmatpush1.msra.mxu0 0.0
        %727 = vmatprep.subr.mxu0 0.0
        %728 = vmatpush1.msra.mxu0 0.0
        %729 = vmatprep.subr.mxu0 0.0
        %730 = vmatpush1.msra.mxu0 0.0
        %731 = vmatprep.subr.mxu0 0.0
        %732 = vmatpush1.msra.mxu0 0.0
        %733 = vmatprep.subr.mxu0 0.0
        %734 = vmatpush1.msra.mxu0 0.0
        %735 = vmatprep.subr.mxu0 0.0
        %736 = vmatpush1.msra.mxu0 0.0
        %737 = vmatprep.subr.mxu0 0.0
        %738 = vmatpush1.msra.mxu0 0.0
        %739 = vmatprep.mubr.f32.mxu0 0.0
        %740 = vmatmul.mubr.f32.gmra.mrb[0].mxu0 %v656
        %v741 = vpop.f32.mrb[0].mxu0
        %v742 = vadd.f32 0.0, %v741
        %v743 = vpop.f32.mrb[0].mxu0
        %744 = vmatprep.mubr.f32.mxu0 0.0
        %745 = vmatmul.mubr.f32.gmra.mrb[0].mxu0 %v657
        %v746 = vpop.f32.mrb[0].mxu0
        %v747 = vadd.f32 0.0, %v746
        %v748 = vpop.f32.mrb[0].mxu0
        %749 = vdwg.mxu0
        %750 = vmatprep.subr.mxu0 0.0
        %751 = vmatpush1.msra.mxu0 %v640
        %752 = vmatprep.subr.mxu0 0.0
        %753 = vmatpush1.msra.mxu0 %v641
        %754 = vmatprep.subr.mxu0 0.0
        %755 = vmatpush1.msra.mxu0 %v642
        %756 = vmatprep.subr.mxu0 0.0
        %757 = vmatpush1.msra.mxu0 %v643
        %758 = vmatprep.subr.mxu0 0.0
        %759 = vmatpush1.msra.mxu0 %v644
        %760 = vmatprep.subr.mxu0 0.0
        %761 = vmatpush1.msra.mxu0 %v645
        %762 = vmatprep.subr.mxu0 0.0
        %763 = vmatpush1.msra.mxu0 %v646
        %764 = vmatprep.subr.mxu0 0.0
        %765 = vmatpush1.msra.mxu0 %v647
        %766 = vmatprep.subr.mxu0 0.0
        %767 = vmatpush1.msra.mxu0 %v648
        %768 = vmatprep.subr.mxu0 0.0
        %769 = vmatpush1.msra.mxu0 %v649
        %770 = vmatprep.subr.mxu0 0.0
        %771 = vmatpush1.msra.mxu0 %v650
        %772 = vmatprep.subr.mxu0 0.0
        %773 = vmatpush1.msra.mxu0 %v651
        %774 = vmatprep.subr.mxu0 0.0
        %775 = vmatpush1.msra.mxu0 %v652
        %776 = vmatprep.subr.mxu0 0.0
        %777 = vmatpush1.msra.mxu0 %v653
        %778 = vmatprep.subr.mxu0 0.0
        %779 = vmatpush1.msra.mxu0 %v654
        %780 = vmatprep.subr.mxu0 0.0
        %781 = vmatpush1.msra.mxu0 %v655
        %782 = vmatprep.subr.mxu0 0.0
        %783 = vmatpush1.msra.mxu0 0.0
        %784 = vmatprep.subr.mxu0 0.0
        %785 = vmatpush1.msra.mxu0 0.0
        %786 = vmatprep.subr.mxu0 0.0
        %787 = vmatpush1.msra.mxu0 0.0
        %788 = vmatprep.subr.mxu0 0.0
        %789 = vmatpush1.msra.mxu0 0.0
        %790 = vmatprep.subr.mxu0 0.0
        %791 = vmatpush1.msra.mxu0 0.0
        %792 = vmatprep.subr.mxu0 0.0
        %793 = vmatpush1.msra.mxu0 0.0
        %794 = vmatprep.subr.mxu0 0.0
        %795 = vmatpush1.msra.mxu0 0.0
        %796 = vmatprep.subr.mxu0 0.0
        %797 = vmatpush1.msra.mxu0 0.0
        %798 = vmatprep.subr.mxu0 0.0
        %799 = vmatpush1.msra.mxu0 0.0
        %800 = vmatprep.subr.mxu0 0.0
        %801 = vmatpush1.msra.mxu0 0.0
        %802 = vmatprep.subr.mxu0 0.0
        %803 = vmatpush1.msra.mxu0 0.0
        %804 = vmatprep.subr.mxu0 0.0
        %805 = vmatpush1.msra.mxu0 0.0
        %806 = vmatprep.subr.mxu0 0.0
        %807 = vmatpush1.msra.mxu0 0.0
        %808 = vmatprep.subr.mxu0 0.0
        %809 = vmatpush1.msra.mxu0 0.0
        %810 = vmatprep.subr.mxu0 0.0
        %811 = vmatpush1.msra.mxu0 0.0
        %812 = vmatprep.subr.mxu0 0.0
        %813 = vmatpush1.msra.mxu0 0.0
        %814 = vmatprep.mubr.f32.mxu0 0.0
        %815 = vmatmul.mubr.f32.gmra.mrb[0].mxu0 %v638
        %v816 = vpop.f32.mrb[0].mxu0
        %v817 = vadd.f32 %v742, %v816
        %v818 = vpop.f32.mrb[0].mxu0
        %819 = vmatprep.mubr.f32.mxu0 0.0
        %820 = vmatmul.mubr.f32.gmra.mrb[0].mxu0 %v639
        %v821 = vpop.f32.mrb[0].mxu0
        %v822 = vadd.f32 %v747, %v821
        %v823 = vpop.f32.mrb[0].mxu0
        %824 = vdwg.mxu0
        %v825 = vld [vmem:[#allocation2 + $0x2] sm:$0xff]
        %v826 = vld [vmem:[#allocation2 + $0xa] sm:$0xff]
        %s827 = scalar_lea.vmem [#allocation8], 256
        %v828 = vld [vmem:[%s827] sm:$0xff]
        %v829 = vld [vmem:[%s827 + $0x8] sm:$0xff]
        %v830 = vld [vmem:[%s827 + $0x10] sm:$0xff]
        %v831 = vld [vmem:[%s827 + $0x18] sm:$0xff]
        %v832 = vld [vmem:[%s827 + $0x20] sm:$0xff]
        %v833 = vld [vmem:[%s827 + $0x28] sm:$0xff]
        %v834 = vld [vmem:[%s827 + $0x30] sm:$0xff]
        %v835 = vld [vmem:[%s827 + $0x38] sm:$0xff]
        %v836 = vld [vmem:[%s827 + $0x40] sm:$0xff]
        %v837 = vld [vmem:[%s827 + $0x48] sm:$0xff]
        %v838 = vld [vmem:[%s827 + $0x50] sm:$0xff]
        %v839 = vld [vmem:[%s827 + $0x58] sm:$0xff]
        %v840 = vld [vmem:[%s827 + $0x60] sm:$0xff]
        %v841 = vld [vmem:[%s827 + $0x68] sm:$0xff]
        %v842 = vld [vmem:[%s827 + $0x70] sm:$0xff]
        %v843 = vld [vmem:[%s827 + $0x78] sm:$0xff]
        %844 = vmatprep.subr.mxu0 0.0
        %845 = vmatpush1.msra.mxu0 %v828
        %846 = vmatprep.subr.mxu0 0.0
        %847 = vmatpush1.msra.mxu0 %v829
        %848 = vmatprep.subr.mxu0 0.0
        %849 = vmatpush1.msra.mxu0 %v830
        %850 = vmatprep.subr.mxu0 0.0
        %851 = vmatpush1.msra.mxu0 %v831
        %852 = vmatprep.subr.mxu0 0.0
        %853 = vmatpush1.msra.mxu0 %v832
        %854 = vmatprep.subr.mxu0 0.0
        %855 = vmatpush1.msra.mxu0 %v833
        %856 = vmatprep.subr.mxu0 0.0
        %857 = vmatpush1.msra.mxu0 %v834
        %858 = vmatprep.subr.mxu0 0.0
        %859 = vmatpush1.msra.mxu0 %v835
        %860 = vmatprep.subr.mxu0 0.0
        %861 = vmatpush1.msra.mxu0 %v836
        %862 = vmatprep.subr.mxu0 0.0
        %863 = vmatpush1.msra.mxu0 %v837
        %864 = vmatprep.subr.mxu0 0.0
        %865 = vmatpush1.msra.mxu0 %v838
        %866 = vmatprep.subr.mxu0 0.0
        %867 = vmatpush1.msra.mxu0 %v839
        %868 = vmatprep.subr.mxu0 0.0
        %869 = vmatpush1.msra.mxu0 %v840
        %870 = vmatprep.subr.mxu0 0.0
        %871 = vmatpush1.msra.mxu0 %v841
        %872 = vmatprep.subr.mxu0 0.0
        %873 = vmatpush1.msra.mxu0 %v842
        %874 = vmatprep.subr.mxu0 0.0
        %875 = vmatpush1.msra.mxu0 %v843
        %876 = vmatprep.subr.mxu0 0.0
        %877 = vmatpush1.msra.mxu0 0.0
        %878 = vmatprep.subr.mxu0 0.0
        %879 = vmatpush1.msra.mxu0 0.0
        %880 = vmatprep.subr.mxu0 0.0
        %881 = vmatpush1.msra.mxu0 0.0
        %882 = vmatprep.subr.mxu0 0.0
        %883 = vmatpush1.msra.mxu0 0.0
        %884 = vmatprep.subr.mxu0 0.0
        %885 = vmatpush1.msra.mxu0 0.0
        %886 = vmatprep.subr.mxu0 0.0
        %887 = vmatpush1.msra.mxu0 0.0
        %888 = vmatprep.subr.mxu0 0.0
        %889 = vmatpush1.msra.mxu0 0.0
        %890 = vmatprep.subr.mxu0 0.0
        %891 = vmatpush1.msra.mxu0 0.0
        %892 = vmatprep.subr.mxu0 0.0
        %893 = vmatpush1.msra.mxu0 0.0
        %894 = vmatprep.subr.mxu0 0.0
        %895 = vmatpush1.msra.mxu0 0.0
        %896 = vmatprep.subr.mxu0 0.0
        %897 = vmatpush1.msra.mxu0 0.0
        %898 = vmatprep.subr.mxu0 0.0
        %899 = vmatpush1.msra.mxu0 0.0
        %900 = vmatprep.subr.mxu0 0.0
        %901 = vmatpush1.msra.mxu0 0.0
        %902 = vmatprep.subr.mxu0 0.0
        %903 = vmatpush1.msra.mxu0 0.0
        %904 = vmatprep.subr.mxu0 0.0
        %905 = vmatpush1.msra.mxu0 0.0
        %906 = vmatprep.subr.mxu0 0.0
        %907 = vmatpush1.msra.mxu0 0.0
        %908 = vmatprep.mubr.f32.mxu0 0.0
        %909 = vmatmul.mubr.f32.gmra.mrb[0].mxu0 %v825
        %v910 = vpop.f32.mrb[0].mxu0
        %v911 = vadd.f32 0.0, %v910
        %v912 = vpop.f32.mrb[0].mxu0
        %913 = vmatprep.mubr.f32.mxu0 0.0
        %914 = vmatmul.mubr.f32.gmra.mrb[0].mxu0 %v826
        %v915 = vpop.f32.mrb[0].mxu0
        %v916 = vadd.f32 0.0, %v915
        %v917 = vpop.f32.mrb[0].mxu0
        %918 = vdwg.mxu0
        %v919 = vadd.f32 %v817, %v911
        %v920 = vadd.f32 %v822, %v916
        %v921 = vld [vmem:[%s5] sm:$0x1]
        %v923 = vlaneseq
        %v924 = vshrl.u32 %v923, 7
        %v925 = vsub.s32 0, %v924
        %v926 = vrot.slane %v921, %v925
        %v928 = vmul.f32 %v919, %v926
        %v929 = vmul.f32 %v920, %v926
        %v930 = vld [vmem:[%s6] sm:$0x1]
        %v932 = vlaneseq
        %v933 = vshrl.u32 %v932, 7
        %v934 = vsub.s32 0, %v933
        %v935 = vrot.slane %v930, %v934
        %v937 = vadd.f32 %v928, %v935
        %v938 = vadd.f32 %v929, %v935
        %v939 = vld [vmem:[%s287] sm:$0xff]
        %v940 = vld [vmem:[%s287 + $0x8] sm:$0xff]
        %v941 = vadd.f32 %v937, %v939
        %v942 = vadd.f32 %v938, %v940
        %v943 = vmax.f32 %v941, 0.0
        %v944 = vmax.f32 %v942, 0.0
        %945 = vst [vmem:[%s325] sm:$0xff] %v943
        %946 = vst [vmem:[%s325 + $0x8] sm:$0xff] %v944
        %s947 = sand.u32 %s185, 1
        %s948 = scalar_lea.sflag [#allocation5], %s947
        %s949 = sand.u32 %s185, 1
        %s950 = smul.addr %s949, 16
        %s951 = scalar_lea.vmem [#allocation9], %s950
        // Predicated region
        $region61: #{tpu_custom_call.1} parent=47 // pred_check
          %p952 = pneg %p195
        $region62: #{tpu_custom_call.1} parent=47 // pred_check_branch
          %954 = sbr.rel (%p952) target = $region64
        $region63: #{tpu_custom_call.1} parent=47 // pred_region
          %s956 = ssub.s32 256, 256
          %957 = vsyncadd %s948, %s956
          %s958 = smul.addr %s25, 2
          %s959 = smul.addr %s958, 128
          %s960 = scalar_lea.hbm %s7, %s959
          %s961 = sshll.u32 %s951, 4
          %s962 = int_to_ptr.vmem [resolvable:$true] %s961
          %967 = dma.vmem_to_hbm [thread:$0]  %s962, 256, %s960, %s948, 128, 128, 8
        $region64: #{tpu_custom_call.1} parent=47 // pred_fallthru
          _
      $region48: #{tpu_custom_call.1} parent=5 // pred_fallthru
        _
      %p968 = scmp.le.s32.totalorder 2, %s20
      // Predicated region
      $region65: #{tpu_custom_call.1} parent=5 // pred_check
        %p969 = pneg %p968
      $region66: #{tpu_custom_call.1} parent=5 // pred_check_branch
        %971 = sbr.rel (%p969) target = $region68
      $region67: #{tpu_custom_call.1} parent=5 // pred_region
        %s972 = ssub.s32 %s20, 2
        // Predicated region
        $region69: #{tpu_custom_call.1} parent=67 // pred_check
          %p973 = pneg %p201
        $region70: #{tpu_custom_call.1} parent=67 // pred_check_branch
          %975 = sbr.rel (%p973) target = $region72
        $region71: #{tpu_custom_call.1} parent=67 // pred_region
          %s976 = sand.u32 %s186, 1
          %s977 = scalar_lea.sflag [#allocation5], %s976
          %s978 = sand.u32 %s186, 1
          %s979 = smul.addr %s978, 16
          %s980 = scalar_lea.vmem [#allocation9], %s979
          %981 = dma.done %s977, 256
        $region72: #{tpu_custom_call.1} parent=67 // pred_fallthru
          _
      $region68: #{tpu_custom_call.1} parent=5 // pred_fallthru
        _
    $region6: #{tpu_custom_call.1} parent=1 // loop_footer
      %s24 = sadd.s32 1, %s20
    $region7: #{tpu_custom_call.1} parent=1 // loop_footer_branch
      %19 = sbr.rel target = $region3
    $region8: #{tpu_custom_call.1} parent=1 // loop_exit
      _
    %982 = vsyncpa [#allocation4], 1
    %s983 = scalar_lea.sflag [#allocation4], 1
    %984 = vsyncpa %s983, 1
    %985 = vsyncpa [#allocation7], 1
    %986 = vsyncpa [#allocation5], 1
    %s987 = scalar_lea.sflag [#allocation5], 1
    %988 = vsyncpa %s987, 1

</llo_original>
